<compile_context>
chip_gen: v5e
topology: v5e:2x2
jax: 0.10.0
libtpu: 0.0.40
codegen_flags: <defaults>
</compile_context>

<pallas_src>
import functools

import numpy as np
import jax
import jax.numpy as jnp
from jax.experimental import pallas as pl
from jax.experimental.pallas import tpu as pltpu

# Hyperparameters (stand-in for the AHP dict in the original code).
AHP = {
    "player_num": 2,
    "state_embed_size": 32,
    "lstm_num_layer": 1,
    "lstm_hidden_size": 32,
    "action_size": 8,
}

_PAD_B = 8  # batch rows padded to one full sublane tile


# ----------------------------------------------------------------------------
# Static slab layout (row offsets into the packed weight / bias slabs).
# ----------------------------------------------------------------------------
def _layout(ahp):
    E = ahp["state_embed_size"]
    H = ahp["lstm_hidden_size"]
    L = ahp["lstm_num_layer"]
    assert H % 8 == 0 and E % 8 == 0 and 4 * H <= 128 and E <= 128
    offs = {"enc1": 0}
    r = 128                                  # enc1: (8,128) feat @ (128,128)
    offs["fc"] = r
    r += 128                                 # fc:   (8,128) e1   @ (128,128)
    lstm = []
    for l in range(L):
        rows = (E if l == 0 else H) + H      # fused [x|h] weight rows
        assert rows % 8 == 0
        lstm.append((r, rows))
        r += rows
    offs["lstm"] = tuple(lstm)
    offs["a1"] = r
    r += H                                   # a1: (8,H) h @ (H,128)
    offs["a2"] = r
    r += 128                                 # a2: (8,128) a1 @ (128,128)
    offs["w_rows"] = r
    offs["b_rows"] = ((4 + L + 7) // 8) * 8  # enc1, fc, L lstm, a1, a2 biases
    return offs


# ----------------------------------------------------------------------------
# Fused forward kernel: encoder -> stacked LSTM (1 step) -> action head.
# ----------------------------------------------------------------------------
def _model_fwd_kernel(feat_ref, state_ref, w_ref, b_ref,
                      action_ref, state_out_ref,
                      *, n_layers, hidden_dim, embed_dim, action_size, offs):
    H, E, A = hidden_dim, embed_dim, action_size
    R = feat_ref.shape[0]                    # padded batch rows (8)
    f32, bf16 = jnp.float32, jnp.bfloat16

    b_all = b_ref[...]                       # (b_rows, 128) f32, loaded once

    # ---------------- Encoder: two fused MXU passes ----------------
    # /10 scale and pos/action/stock permutation are folded into w_enc1.
    feat = feat_ref[...].astype(bf16)                                # (8,128)
    o = offs["enc1"]
    e1 = jnp.maximum(
        jnp.dot(feat, w_ref[o:o + 128, :], preferred_element_type=f32)
        + b_all[0:1, :], 0.0)                                        # (8,128)
    o = offs["fc"]
    x_full = jnp.maximum(
        jnp.dot(e1.astype(bf16), w_ref[o:o + 128, :],
                preferred_element_type=f32)
        + b_all[1:2, :], 0.0)                                        # (8,128)
    layer_in = x_full[:, :E]                                         # (8,E)

    # ---------------- Core: stacked LSTM, single time step ----------------
    # PyTorch gate order [i, f, g, o]; g (lanes [2H,3H)) uses tanh.
    lane4h = jax.lax.broadcasted_iota(jnp.int32, (R, 4 * H), 1)
    g_mask = (lane4h >= 2 * H) & (lane4h < 3 * H)

    for l in range(n_layers):
        st = state_ref[l]                                            # (8,128)
        h_prev = st[:, 0:H]
        c_prev = st[:, H:2 * H]
        o, rows = offs["lstm"][l]
        w_l = w_ref[o:o + rows, 0:4 * H]                             # (in+H,4H)

        xh = jnp.concatenate([layer_in, h_prev], axis=-1).astype(bf16)
        gates = (jnp.dot(xh, w_l, preferred_element_type=f32)
                 + b_all[2 + l:3 + l, 0:4 * H])                      # (8,4H)

        # Full-vreg EUP passes combined with a lane mask; slice afterwards.
        acts = jnp.where(g_mask, jnp.tanh(gates), jax.nn.sigmoid(gates))
        i_g = acts[:, 0:H]
        f_g = acts[:, H:2 * H]
        g_g = acts[:, 2 * H:3 * H]
        o_g = acts[:, 3 * H:4 * H]

        c_new = f_g * c_prev + i_g * g_g
        h_new = o_g * jnp.tanh(c_new)

        parts = [h_new, c_new]
        if 2 * H < 128:
            parts.append(jnp.zeros((R, 128 - 2 * H), f32))
        state_out_ref[l] = jnp.concatenate(parts, axis=-1)  # unmasked (8,128)
        layer_in = h_new

    # ---------------- Action head: Linear -> ReLU -> Linear -> Softmax ------
    o = offs["a1"]
    a1 = jnp.maximum(
        jnp.dot(layer_in.astype(bf16), w_ref[o:o + H, :],
                preferred_element_type=f32)
        + b_all[2 + n_layers:3 + n_layers, :], 0.0)                  # (8,128)
    o = offs["a2"]
    logits = (jnp.dot(a1.astype(bf16), w_ref[o:o + 128, :],
                      preferred_element_type=f32)
              + b_all[3 + n_layers:4 + n_layers, :])                 # (8,128)

    lane = jax.lax.broadcasted_iota(jnp.int32, (R, 128), 1)
    logits = jnp.where(lane < A, logits, -1e30)          # mask padding lanes
    m = jnp.max(logits, axis=-1, keepdims=True)
    e = jnp.exp(logits - m)
    denom = jnp.sum(e, axis=-1, keepdims=True)
    action_ref[...] = e * pl.reciprocal(denom, approx=True)  # unmasked store


# ----------------------------------------------------------------------------
# Parameter construction.
# ----------------------------------------------------------------------------
def _linear_init(key, out_dim, in_dim):
    """Matches PyTorch nn.Linear default init: U(-1/sqrt(in), 1/sqrt(in))."""
    bound = float(in_dim) ** -0.5
    kw, kb = jax.random.split(key)
    w = jax.random.uniform(kw, (out_dim, in_dim), jnp.float32, -bound, bound)
    b = jax.random.uniform(kb, (out_dim,), jnp.float32, -bound, bound)
    return w, b


def init_raw_params(key, ahp):
    """Raw PyTorch-layout parameters (used by the pure-JAX reference)."""
    P = ahp["player_num"]
    E = ahp["state_embed_size"]
    H = ahp["lstm_hidden_size"]
    L = ahp["lstm_num_layer"]
    A = ahp["action_size"]

    keys = jax.random.split(key, 6 + L)
    raw = {
        "enc_pos": _linear_init(keys[0], 48, 2 * P),
        "enc_act": _linear_init(keys[1], 64, 3 * P),
        "enc_stock": _linear_init(keys[2], 16, P),
        "enc_fc": _linear_init(keys[3], E, 128),
        "act_fc1": _linear_init(keys[4], 64, H),
        "act_fc2": _linear_init(keys[5], A, 64),
        "lstm": [],
    }
    bound = float(H) ** -0.5
    for layer in range(L):
        in_dim = E if layer == 0 else H
        k = jax.random.split(keys[6 + layer], 4)
        raw["lstm"].append({
            "wih": jax.random.uniform(k[0], (4 * H, in_dim), jnp.float32, -bound, bound),
            "whh": jax.random.uniform(k[1], (4 * H, H), jnp.float32, -bound, bound),
            "b_ih": jax.random.uniform(k[2], (4 * H,), jnp.float32, -bound, bound),
            "b_hh": jax.random.uniform(k[3], (4 * H,), jnp.float32, -bound, bound),
        })
    return raw


def pack_params(raw, ahp):
    """One bf16 weight slab + one f32 bias slab, MXU/lane friendly layouts."""
    P = ahp["player_num"]
    E = ahp["state_embed_size"]
    H = ahp["lstm_hidden_size"]
    L = ahp["lstm_num_layer"]
    A = ahp["action_size"]
    offs = _layout(ahp)

    W = np.zeros((offs["w_rows"], 128), np.float32)
    B = np.zeros((offs["b_rows"], 128), np.float32)

    # Block-diagonal fusion of pos(48)/action(64)/stock(16) embeds, with rows
    # permuted to the natural x.reshape(B, 6P) feature order and the /10 scale
    # folded in.  Rows [6P,128) stay zero (feat tile is zero-padded).
    w_pos, b_pos = map(np.asarray, raw["enc_pos"])     # (48, 2P)
    w_act, b_act = map(np.asarray, raw["enc_act"])     # (64, 3P)
    w_stk, b_stk = map(np.asarray, raw["enc_stock"])   # (16, P)
    r = offs["enc1"]
    for p in range(P):
        for k in range(2):
            W[r + p * 6 + k, 0:48] = w_pos[:, p * 2 + k]
        for j in range(3):
            W[r + p * 6 + 2 + j, 48:112] = w_act[:, p * 3 + j]
        W[r + p * 6 + 5, 112:128] = w_stk[:, p]
    W[r:r + 128, :] /= 10.0                      # fold x.float()/10
    B[0, 0:48], B[0, 48:112], B[0, 112:128] = b_pos, b_act, b_stk

    w_fc, b_fc = map(np.asarray, raw["enc_fc"])        # (E,128), (E,)
    W[offs["fc"]:offs["fc"] + 128, 0:E] = w_fc.T
    B[1, 0:E] = b_fc

    for l, lp in enumerate(raw["lstm"]):
        o, rows = offs["lstm"][l]
        wih, whh = np.asarray(lp["wih"]), np.asarray(lp["whh"])
        W[o:o + rows, 0:4 * H] = np.concatenate([wih.T, whh.T], axis=0)
        B[2 + l, 0:4 * H] = np.asarray(lp["b_ih"]) + np.asarray(lp["b_hh"])

    w_a1, b_a1 = map(np.asarray, raw["act_fc1"])       # (64, H)
    W[offs["a1"]:offs["a1"] + H, 0:64] = w_a1.T
    B[2 + L, 0:64] = b_a1

    w_a2, b_a2 = map(np.asarray, raw["act_fc2"])       # (A, 64)
    W[offs["a2"]:offs["a2"] + 64, 0:A] = w_a2.T
    B[3 + L, 0:A] = b_a2

    return jnp.asarray(W, jnp.bfloat16), jnp.asarray(B, jnp.float32)


# ----------------------------------------------------------------------------
# Wrapper (jitted): feature padding -> single pallas_call -> output slicing.
# ----------------------------------------------------------------------------
def make_model_forward(ahp):
    P = ahp["player_num"]
    E = ahp["state_embed_size"]
    H = ahp["lstm_hidden_size"]
    L = ahp["lstm_num_layer"]
    A = ahp["action_size"]
    offs = _layout(ahp)

    kernel = functools.partial(
        _model_fwd_kernel, n_layers=L, hidden_dim=H, embed_dim=E,
        action_size=A, offs=offs)
    vmem = pl.BlockSpec(memory_space=pltpu.MemorySpace.VMEM)

    @jax.jit
    def forward(x, w_slab, b_slab, state):
        """x: (B, P, 6); state: (L, 8, 128) with h in lanes [0,H), c in [H,2H).

        Returns (action_probs (B, A), new_state (L, 8, 128)).
        """
        Bsz = x.shape[0]
        feat = jnp.zeros((_PAD_B, 128), jnp.float32)
        feat = feat.at[:Bsz, :6 * P].set(
            x.reshape(Bsz, 6 * P).astype(jnp.float32))

        action_slab, new_state = pl.pallas_call(
            kernel,
            out_shape=(
                jax.ShapeDtypeStruct((_PAD_B, 128), jnp.float32),
                jax.ShapeDtypeStruct((L, _PAD_B, 128), jnp.float32),
            ),
            in_specs=[vmem, vmem, vmem, vmem],
            out_specs=(vmem, vmem),
            # The state output aliases the state input so autoregressive calls
            # update the recurrent state in place.
            input_output_aliases={1: 1},
        )(feat, state, w_slab, b_slab)

        return action_slab[:Bsz, :A], new_state

    return forward


def init_state(ahp, batch):
    assert batch <= _PAD_B
    return jnp.zeros((ahp["lstm_num_layer"], _PAD_B, 128), jnp.float32)


def unpack_state(state, batch, hidden):
    return state[:, :batch, :hidden], state[:, :batch, hidden:2 * hidden]


# ----------------------------------------------------------------------------
# Pure-JAX reference (mirrors the PyTorch module op-by-op, raw f32 weights).
# ----------------------------------------------------------------------------
def model_forward_ref(x, raw, hidden_state=None):
    B = x.shape[0]
    relu = lambda v: jnp.maximum(v, 0.0)
    xf = x.astype(jnp.float32) / 10.0
    pos = xf[:, :, 0:2].reshape(B, -1)
    act = xf[:, :, 2:5].reshape(B, -1)
    stk = xf[:, :, 5].reshape(B, -1)
    w, b = raw["enc_pos"]; pe = relu(pos @ w.T + b)
    w, b = raw["enc_act"]; ae = relu(act @ w.T + b)
    w, b = raw["enc_stock"]; se = relu(stk @ w.T + b)
    state = jnp.concatenate([pe, ae, se], axis=1)
    w, b = raw["enc_fc"]; emb = relu(state @ w.T + b)

    L = len(raw["lstm"])
    H = raw["lstm"][0]["whh"].shape[1]
    if hidden_state is None:
        h0 = jnp.zeros((L, B, H), jnp.float32)
        c0 = jnp.zeros((L, B, H), jnp.float32)
    else:
        h0, c0 = hidden_state
    xin = emb
    hs, cs = [], []
    for l, lp in enumerate(raw["lstm"]):
        gates = xin @ lp["wih"].T + lp["b_ih"] + h0[l] @ lp["whh"].T + lp["b_hh"]
        i = jax.nn.sigmoid(gates[:, 0 * H:1 * H])
        f = jax.nn.sigmoid(gates[:, 1 * H:2 * H])
        g = jnp.tanh(gates[:, 2 * H:3 * H])
        o = jax.nn.sigmoid(gates[:, 3 * H:4 * H])
        c_new = f * c0[l] + i * g
        h_new = o * jnp.tanh(c_new)
        hs.append(h_new); cs.append(c_new); xin = h_new
    w, b = raw["act_fc1"]; a1 = relu(xin @ w.T + b)
    w, b = raw["act_fc2"]; logits = a1 @ w.T + b
    return jax.nn.softmax(logits, axis=-1), (jnp.stack(hs), jnp.stack(cs))


# ----------------------------------------------------------------------------
if __name__ == "__main__":
    batch = 2
    P = AHP["player_num"]
    H = AHP["lstm_hidden_size"]
    A = AHP["action_size"]
    L = AHP["lstm_num_layer"]

    key = jax.random.PRNGKey(0)
    k_x, k_p = jax.random.split(key)
    x = jax.random.uniform(k_x, (batch, P, 6), jnp.float32, 0.0, 10.0)

    raw = init_raw_params(k_p, AHP)
    w_slab, b_slab = pack_params(raw, AHP)
    forward = make_model_forward(AHP)

    # Step 1: fresh (zero) hidden state — matches Model.forward on first call.
    state0 = init_state(AHP, batch)
    action, state1 = forward(x, w_slab, b_slab, state0)
    jax.block_until_ready((action, state1))

    assert action.shape == (batch, A)
    assert state1.shape == (L, _PAD_B, 128)

    ref_a, (ref_h, ref_c) = model_forward_ref(x, raw, hidden_state=None)
    h1, c1 = unpack_state(state1, batch, H)

    # bf16 matmul operands (f32 accumulate) vs the f32 reference.
    tol = 5e-2
    maxdiff = lambda a, b: float(jnp.max(jnp.abs(a - b)))
    assert maxdiff(action, ref_a) < tol, maxdiff(action, ref_a)
    assert maxdiff(h1, ref_h) < tol, maxdiff(h1, ref_h)
    assert maxdiff(c1, ref_c) < tol, maxdiff(c1, ref_c)

    # Step 2: reuse the hidden state (exercises the aliased in-place update).
    action2, state2 = forward(x, w_slab, b_slab, state1)
    jax.block_until_ready((action2, state2))
    ref_a2, (ref_h2, ref_c2) = model_forward_ref(x, raw, hidden_state=(ref_h, ref_c))
    h2, c2 = unpack_state(state2, batch, H)
    assert maxdiff(action2, ref_a2) < tol, maxdiff(action2, ref_a2)
    assert maxdiff(h2, ref_h2) < tol, maxdiff(h2, ref_h2)
    assert maxdiff(c2, ref_c2) < tol, maxdiff(c2, ref_c2)

    # TODO(synk): training utilities (put_data / train_net / Adam optimizer)
    # are host-side RL bookkeeping, not part of the forward pass.
    print("KERNEL_OK")
</pallas_src>

<mosaic_0001>
module attributes {stable_mosaic.version = 11 : i64} {
  func.func @_model_fwd_kernel(%arg0: memref<8x128xf32, #tpu.memory_space<vmem>>, %arg1: memref<1x8x128xf32, #tpu.memory_space<vmem>>, %arg2: memref<480x128xbf16, #tpu.memory_space<vmem>>, %arg3: memref<8x128xf32, #tpu.memory_space<vmem>>, %arg4: memref<8x128xf32, #tpu.memory_space<vmem>>, %arg5: memref<1x8x128xf32, #tpu.memory_space<vmem>>) attributes {dimension_semantics = [], scalar_prefetch = 0 : i64, scratch_operands = 0 : i64, tpu.core_type = #tpu.core_type<tc>} {
    %c0 = arith.constant 0 : index
    %c0_0 = arith.constant 0 : index
    %0 = vector.load %arg3[%c0, %c0_0] : memref<8x128xf32, #tpu.memory_space<vmem>>, vector<8x128xf32>
    %c0_1 = arith.constant 0 : index
    %c0_2 = arith.constant 0 : index
    %1 = vector.load %arg0[%c0_1, %c0_2] : memref<8x128xf32, #tpu.memory_space<vmem>>, vector<8x128xf32>
    %2 = arith.truncf %1 : vector<8x128xf32> to vector<8x128xbf16>
    %c0_3 = arith.constant 0 : index
    %c0_4 = arith.constant 0 : index
    %3 = vector.load %arg2[%c0_3, %c0_4] : memref<480x128xbf16, #tpu.memory_space<vmem>>, vector<128x128xbf16>
    %cst = arith.constant dense<0.000000e+00> : vector<8x128xf32>
    %4 = tpu.matmul %2, %3, %cst {dimension_numbers = #tpu.dot_dimension_numbers<[1], [0], [0], [1], [0, 0, 1, 1], [], []>} : vector<8x128xbf16>, vector<128x128xbf16>, vector<8x128xf32> -> vector<8x128xf32>
    %5 = vector.extract_strided_slice %0 {offsets = [0, 0], sizes = [1, 128], strides = [1, 1]} : vector<8x128xf32> to vector<1x128xf32>
    %6 = vector.broadcast %5 : vector<1x128xf32> to vector<8x128xf32>
    %7 = arith.addf %4, %6 : vector<8x128xf32>
    %cst_5 = arith.constant 0.000000e+00 : f32
    %8 = vector.broadcast %cst_5 : f32 to vector<8x128xf32>
    %9 = arith.maximumf %7, %8 : vector<8x128xf32>
    %10 = arith.truncf %9 : vector<8x128xf32> to vector<8x128xbf16>
    %c128 = arith.constant 128 : index
    %c0_6 = arith.constant 0 : index
    %11 = vector.load %arg2[%c128, %c0_6] : memref<480x128xbf16, #tpu.memory_space<vmem>>, vector<128x128xbf16>
    %cst_7 = arith.constant dense<0.000000e+00> : vector<8x128xf32>
    %12 = tpu.matmul %10, %11, %cst_7 {dimension_numbers = #tpu.dot_dimension_numbers<[1], [0], [0], [1], [0, 0, 1, 1], [], []>} : vector<8x128xbf16>, vector<128x128xbf16>, vector<8x128xf32> -> vector<8x128xf32>
    %13 = vector.extract_strided_slice %0 {offsets = [1, 0], sizes = [1, 128], strides = [1, 1]} : vector<8x128xf32> to vector<1x128xf32>
    %14 = vector.broadcast %13 : vector<1x128xf32> to vector<8x128xf32>
    %15 = arith.addf %12, %14 : vector<8x128xf32>
    %cst_8 = arith.constant 0.000000e+00 : f32
    %16 = vector.broadcast %cst_8 : f32 to vector<8x128xf32>
    %17 = arith.maximumf %15, %16 : vector<8x128xf32>
    %18 = vector.extract_strided_slice %17 {offsets = [0, 0], sizes = [8, 32], strides = [1, 1]} : vector<8x128xf32> to vector<8x32xf32>
    %19 = tpu.iota {dimensions = array<i32: 1>} : vector<8x128xi32>
    %c64_i32 = arith.constant 64 : i32
    %20 = vector.broadcast %c64_i32 : i32 to vector<8x128xi32>
    %21 = arith.cmpi sge, %19, %20 : vector<8x128xi32>
    %c96_i32 = arith.constant 96 : i32
    %22 = vector.broadcast %c96_i32 : i32 to vector<8x128xi32>
    %23 = arith.cmpi slt, %19, %22 : vector<8x128xi32>
    %24 = arith.andi %21, %23 : vector<8x128xi1>
    %c0_9 = arith.constant 0 : index
    %c0_10 = arith.constant 0 : index
    %c0_11 = arith.constant 0 : index
    %25 = vector.load %arg1[%c0_9, %c0_10, %c0_11] : memref<1x8x128xf32, #tpu.memory_space<vmem>>, vector<1x8x128xf32>
    %26 = vector.shape_cast %25 : vector<1x8x128xf32> to vector<8x128xf32>
    %27 = vector.extract_strided_slice %26 {offsets = [0, 0], sizes = [8, 32], strides = [1, 1]} : vector<8x128xf32> to vector<8x32xf32>
    %28 = vector.extract_strided_slice %26 {offsets = [0, 32], sizes = [8, 32], strides = [1, 1]} : vector<8x128xf32> to vector<8x32xf32>
    %c256 = arith.constant 256 : index
    %c0_12 = arith.constant 0 : index
    %29 = vector.load %arg2[%c256, %c0_12] : memref<480x128xbf16, #tpu.memory_space<vmem>>, vector<64x128xbf16>
    %30 = tpu.concatenate %18, %27 in 1 : vector<8x32xf32>, vector<8x32xf32> -> vector<8x64xf32>
    %31 = arith.truncf %30 : vector<8x64xf32> to vector<8x64xbf16>
    %cst_13 = arith.constant dense<0.000000e+00> : vector<8x128xf32>
    %32 = tpu.matmul %31, %29, %cst_13 {dimension_numbers = #tpu.dot_dimension_numbers<[1], [0], [0], [1], [0, 0, 1, 1], [], []>} : vector<8x64xbf16>, vector<64x128xbf16>, vector<8x128xf32> -> vector<8x128xf32>
    %33 = vector.extract_strided_slice %0 {offsets = [2, 0], sizes = [1, 128], strides = [1, 1]} : vector<8x128xf32> to vector<1x128xf32>
    %34 = vector.broadcast %33 : vector<1x128xf32> to vector<8x128xf32>
    %35 = arith.addf %32, %34 : vector<8x128xf32>
    %36 = math.tanh %35 : vector<8x128xf32>
    %37 = arith.negf %35 : vector<8x128xf32>
    %38 = math.exp %37 : vector<8x128xf32>
    %cst_14 = arith.constant 1.000000e+00 : f32
    %39 = vector.broadcast %cst_14 : f32 to vector<8x128xf32>
    %40 = arith.addf %39, %38 : vector<8x128xf32>
    %41 = arith.divf %39, %40 : vector<8x128xf32>
    %42 = arith.select %24, %36, %41 : vector<8x128xi1>, vector<8x128xf32>
    %43 = vector.extract_strided_slice %42 {offsets = [0, 0], sizes = [8, 32], strides = [1, 1]} : vector<8x128xf32> to vector<8x32xf32>
    %44 = vector.extract_strided_slice %42 {offsets = [0, 32], sizes = [8, 32], strides = [1, 1]} : vector<8x128xf32> to vector<8x32xf32>
    %45 = vector.extract_strided_slice %42 {offsets = [0, 64], sizes = [8, 32], strides = [1, 1]} : vector<8x128xf32> to vector<8x32xf32>
    %46 = vector.extract_strided_slice %42 {offsets = [0, 96], sizes = [8, 32], strides = [1, 1]} : vector<8x128xf32> to vector<8x32xf32>
    %47 = arith.mulf %44, %28 : vector<8x32xf32>
    %48 = arith.mulf %43, %45 : vector<8x32xf32>
    %49 = arith.addf %47, %48 : vector<8x32xf32>
    %50 = math.tanh %49 : vector<8x32xf32>
    %51 = arith.mulf %46, %50 : vector<8x32xf32>
    %cst_15 = arith.constant 0.000000e+00 : f32
    %52 = vector.broadcast %cst_15 : f32 to vector<8x64xf32>
    %53 = tpu.concatenate %51, %49, %52 in 1 : vector<8x32xf32>, vector<8x32xf32>, vector<8x64xf32> -> vector<8x128xf32>
    %c0_16 = arith.constant 0 : index
    %c0_17 = arith.constant 0 : index
    %c0_18 = arith.constant 0 : index
    %54 = vector.load %arg5[%c0_16, %c0_17, %c0_18] : memref<1x8x128xf32, #tpu.memory_space<vmem>>, vector<1x8x128xf32>
    %55 = vector.shape_cast %54 : vector<1x8x128xf32> to vector<8x128xf32>
    %56 = vector.shape_cast %53 : vector<8x128xf32> to vector<1x8x128xf32>
    tpu.vector_store %arg5[%c0_16, %c0_17, %c0_18], %56 {strides = array<i32>} : memref<1x8x128xf32, #tpu.memory_space<vmem>>, vector<1x8x128xf32>,
    %57 = arith.truncf %51 : vector<8x32xf32> to vector<8x32xbf16>
    %c320 = arith.constant 320 : index
    %c0_19 = arith.constant 0 : index
    %58 = vector.load %arg2[%c320, %c0_19] : memref<480x128xbf16, #tpu.memory_space<vmem>>, vector<32x128xbf16>
    %cst_20 = arith.constant dense<0.000000e+00> : vector<8x128xf32>
    %59 = tpu.matmul %57, %58, %cst_20 {dimension_numbers = #tpu.dot_dimension_numbers<[1], [0], [0], [1], [0, 0, 1, 1], [], []>} : vector<8x32xbf16>, vector<32x128xbf16>, vector<8x128xf32> -> vector<8x128xf32>
    %60 = vector.extract_strided_slice %0 {offsets = [3, 0], sizes = [1, 128], strides = [1, 1]} : vector<8x128xf32> to vector<1x128xf32>
    %61 = vector.broadcast %60 : vector<1x128xf32> to vector<8x128xf32>
    %62 = arith.addf %59, %61 : vector<8x128xf32>
    %cst_21 = arith.constant 0.000000e+00 : f32
    %63 = vector.broadcast %cst_21 : f32 to vector<8x128xf32>
    %64 = arith.maximumf %62, %63 : vector<8x128xf32>
    %65 = arith.truncf %64 : vector<8x128xf32> to vector<8x128xbf16>
    %c352 = arith.constant 352 : index
    %c0_22 = arith.constant 0 : index
    %66 = vector.load %arg2[%c352, %c0_22] : memref<480x128xbf16, #tpu.memory_space<vmem>>, vector<128x128xbf16>
    %cst_23 = arith.constant dense<0.000000e+00> : vector<8x128xf32>
    %67 = tpu.matmul %65, %66, %cst_23 {dimension_numbers = #tpu.dot_dimension_numbers<[1], [0], [0], [1], [0, 0, 1, 1], [], []>} : vector<8x128xbf16>, vector<128x128xbf16>, vector<8x128xf32> -> vector<8x128xf32>
    %68 = vector.extract_strided_slice %0 {offsets = [4, 0], sizes = [1, 128], strides = [1, 1]} : vector<8x128xf32> to vector<1x128xf32>
    %69 = vector.broadcast %68 : vector<1x128xf32> to vector<8x128xf32>
    %70 = arith.addf %67, %69 : vector<8x128xf32>
    %71 = tpu.iota {dimensions = array<i32: 1>} : vector<8x128xi32>
    %c8_i32 = arith.constant 8 : i32
    %72 = vector.broadcast %c8_i32 : i32 to vector<8x128xi32>
    %73 = arith.cmpi slt, %71, %72 : vector<8x128xi32>
    %cst_24 = arith.constant -1.000000e+30 : f32
    %74 = vector.broadcast %cst_24 : f32 to vector<8x128xf32>
    %75 = arith.select %73, %70, %74 : vector<8x128xi1>, vector<8x128xf32>
    %cst_25 = arith.constant dense<0xFF800000> : vector<8xf32>
    %76 = vector.multi_reduction <maximumf>, %75, %cst_25 [1] : vector<8x128xf32> to vector<8xf32>
    %77 = vector.shape_cast %76 : vector<8xf32> to vector<8x1xf32>
    %78 = vector.broadcast %77 : vector<8x1xf32> to vector<8x128xf32>
    %79 = arith.subf %75, %78 : vector<8x128xf32>
    %80 = math.exp %79 : vector<8x128xf32>
    %cst_26 = arith.constant dense<0.000000e+00> : vector<8xf32>
    %81 = vector.multi_reduction <add>, %80, %cst_26 [1] : vector<8x128xf32> to vector<8xf32>
    %82 = vector.shape_cast %81 : vector<8xf32> to vector<8x1xf32>
    %83 = tpu.reciprocal %82 {approx = true} : vector<8x1xf32> -> vector<8x1xf32>
    %84 = vector.broadcast %83 : vector<8x1xf32> to vector<8x128xf32>
    %85 = arith.mulf %80, %84 : vector<8x128xf32>
    %c0_27 = arith.constant 0 : index
    %c0_28 = arith.constant 0 : index
    %86 = vector.load %arg4[%c0_27, %c0_28] : memref<8x128xf32, #tpu.memory_space<vmem>>, vector<8x128xf32>
    tpu.vector_store %arg4[%c0_27, %c0_28], %85 {strides = array<i32>} : memref<8x128xf32, #tpu.memory_space<vmem>>, vector<8x128xf32>,
    return
  }
}

</mosaic_0001>

<llo_original>
// kernel: forward.1
$region0: #{forward.1}
  #allocation0 [shape = 'u32[]', space=smem, size = 0x4, offset = 0x4, fixed_abs, tag = 'smem constant byte address 0x4 - core index']
  #allocation1 [shape = 'u32[72,128]{1,0:T(1,128)}', space=vmem, size = 0x9000, scoped, tag = 'internal scratch']
  %s0 = inlined_call_operand.vmem [shape: f32[8,128], index: 0, kind: input, shape index: {}]
  %s1 = inlined_call_operand.vmem [shape: f32[1,8,128], index: 1, kind: input, shape index: {}, may-alias: {1,5}]
  %s2 = inlined_call_operand.hbm [shape: bf16[480,128], index: 2, kind: input, shape index: {}]
  %s3 = inlined_call_operand.vmem [shape: f32[8,128], index: 3, kind: input, shape index: {}]
  %s4 = inlined_call_operand.vmem [shape: f32[8,128], index: 4, kind: output, shape index: {0}]
  %s5 = inlined_call_operand.vmem [shape: f32[1,8,128], index: 5, kind: output, shape index: {1}, may-alias: {1,5}]
  %6 = xla_tuple %s4, %s5
  %s7 = sld [smem:[#allocation0]]
  $region38: #{forward.1} parent=0
    _
  %s9 = ssub.s32 1, %s7
  %s10 = scalar_select 0, %s9, %s7
  $region1: #{forward.1} parent=0
    #allocation2 [shape = 'u8[122880]{0}', space=vmem, size = 0x1e000, scoped, tag = 'input window, operand 2, single buffered']
    #allocation3 [shape = 's32[1]{0}', space=sflag, size = 0x4, scoped, tag = 'scoped memory for forward.1']
    %11 = vsyncpa [#allocation3], 0
    // Predicated region
    $region2: #{forward.1} parent=1 // pred_check
      _
    $region3: #{forward.1} parent=1 // pred_check_branch
      %13 = sbr.rel (0) target = $region5
    $region4: #{forward.1} parent=1 // pred_region
      _
    $region5: #{forward.1} parent=1 // pred_fallthru
      _
    // Predicated region
    $region6: #{forward.1} parent=1 // pred_check
      _
    $region7: #{forward.1} parent=1 // pred_check_branch
      %15 = sbr.rel (0) target = $region9
    $region8: #{forward.1} parent=1 // pred_region
      _
    $region9: #{forward.1} parent=1 // pred_fallthru
      _
    // Predicated region
    $region10: #{forward.1} parent=1 // pred_check
      _
    $region11: #{forward.1} parent=1 // pred_check_branch
      %17 = sbr.rel (0) target = $region13
    $region12: #{forward.1} parent=1 // pred_region
      %19 = vsyncadd [#allocation3], 0
      %s20 = sshll.u32 %s2, 4
      %s21 = int_to_ptr.hbm [resolvable:$true] %s20
      %s22 = sshll.u32 [#allocation2], 4
      %s23 = int_to_ptr.vmem [resolvable:$true] %s22
      %28 = dma.hbm_to_vmem [thread:$0]  %s21, 3840, %s23, [#allocation3], 64, 64, 4
    $region13: #{forward.1} parent=1 // pred_fallthru
      _
    // Predicated region
    $region14: #{forward.1} parent=1 // pred_check
      _
    $region15: #{forward.1} parent=1 // pred_check_branch
      %30 = sbr.rel (0) target = $region17
    $region16: #{forward.1} parent=1 // pred_region
      _
    $region17: #{forward.1} parent=1 // pred_fallthru
      _
    // Predicated region
    $region18: #{forward.1} parent=1 // pred_check
      _
    $region19: #{forward.1} parent=1 // pred_check_branch
      %32 = sbr.rel (0) target = $region21
    $region20: #{forward.1} parent=1 // pred_region
      %34 = dma.done [#allocation3], 3840
    $region21: #{forward.1} parent=1 // pred_fallthru
      _
    %v36 = vld [vmem:[%s3] sm:$0xff]
    %v37 = vld [vmem:[%s0] sm:$0xff]
    %v38 = vpack.c.bf16 %v37, %v37
    %v39 = vld [vmem:[#allocation2] sm:$0xf]
    %v40 = vld [vmem:[#allocation2 + $0x4] sm:$0xf]
    %v41 = vld [vmem:[#allocation2 + $0x8] sm:$0xf]
    %v42 = vld [vmem:[#allocation2 + $0xc] sm:$0xf]
    %v43 = vld [vmem:[#allocation2 + $0x10] sm:$0xf]
    %v44 = vld [vmem:[#allocation2 + $0x14] sm:$0xf]
    %v45 = vld [vmem:[#allocation2 + $0x18] sm:$0xf]
    %v46 = vld [vmem:[#allocation2 + $0x1c] sm:$0xf]
    %v47 = vld [vmem:[#allocation2 + $0x20] sm:$0xf]
    %v48 = vld [vmem:[#allocation2 + $0x24] sm:$0xf]
    %v49 = vld [vmem:[#allocation2 + $0x28] sm:$0xf]
    %v50 = vld [vmem:[#allocation2 + $0x2c] sm:$0xf]
    %v51 = vld [vmem:[#allocation2 + $0x30] sm:$0xf]
    %v52 = vld [vmem:[#allocation2 + $0x34] sm:$0xf]
    %v53 = vld [vmem:[#allocation2 + $0x38] sm:$0xf]
    %v54 = vld [vmem:[#allocation2 + $0x3c] sm:$0xf]
    %v55 = vperm.slane %v36, 0
    %v72 = vunpack.c.l.b16 %v39
    %v73 = vunpack.c.l.b16 %v40
    %v74 = vunpack.c.l.b16 %v41
    %v75 = vunpack.c.l.b16 %v42
    %v76 = vunpack.c.l.b16 %v43
    %v77 = vunpack.c.l.b16 %v44
    %v78 = vunpack.c.l.b16 %v45
    %v79 = vunpack.c.l.b16 %v46
    %v80 = vunpack.c.l.b16 %v47
    %v81 = vunpack.c.l.b16 %v48
    %v82 = vunpack.c.l.b16 %v49
    %v83 = vunpack.c.l.b16 %v50
    %v84 = vunpack.c.l.b16 %v51
    %v85 = vunpack.c.l.b16 %v52
    %v86 = vunpack.c.l.b16 %v53
    %v87 = vunpack.c.l.b16 %v54
    %v88 = vpack.c.b16 %v73, %v72
    %v89 = vpack.c.b16 %v75, %v74
    %v90 = vpack.c.b16 %v77, %v76
    %v91 = vpack.c.b16 %v79, %v78
    %v92 = vpack.c.b16 %v81, %v80
    %v93 = vpack.c.b16 %v83, %v82
    %v94 = vpack.c.b16 %v85, %v84
    %v95 = vpack.c.b16 %v87, %v86
    %104 = vmatpush.bf16.msra.mxu0 %v95
    %105 = vmatpush.bf16.msra.mxu0 %v94
    %106 = vmatpush.bf16.msra.mxu0 %v93
    %107 = vmatpush.bf16.msra.mxu0 %v92
    %108 = vmatpush.bf16.msra.mxu0 %v91
    %109 = vmatpush.bf16.msra.mxu0 %v90
    %110 = vmatpush.bf16.msra.mxu0 %v89
    %111 = vmatpush.bf16.msra.mxu0 %v88
    %112 = vmatmul.bf16.gmra.mxu0 %v38
    %v113 = vpop.f32.mrf.mxu0
    %v114 = vadd.f32 %v55, %v113
    %v115 = vpop.f32.mrf.mxu0
    %116 = vdwg.mxu0
    %v117 = vmax.f32 %v114, 0.0
    %v118 = vpack.c.bf16 %v117, %v117
    %v119 = vld [vmem:[#allocation2 + $0x40] sm:$0xf]
    %v120 = vld [vmem:[#allocation2 + $0x44] sm:$0xf]
    %v121 = vld [vmem:[#allocation2 + $0x48] sm:$0xf]
    %v122 = vld [vmem:[#allocation2 + $0x4c] sm:$0xf]
    %v123 = vld [vmem:[#allocation2 + $0x50] sm:$0xf]
    %v124 = vld [vmem:[#allocation2 + $0x54] sm:$0xf]
    %v125 = vld [vmem:[#allocation2 + $0x58] sm:$0xf]
    %v126 = vld [vmem:[#allocation2 + $0x5c] sm:$0xf]
    %v127 = vld [vmem:[#allocation2 + $0x60] sm:$0xf]
    %v128 = vld [vmem:[#allocation2 + $0x64] sm:$0xf]
    %v129 = vld [vmem:[#allocation2 + $0x68] sm:$0xf]
    %v130 = vld [vmem:[#allocation2 + $0x6c] sm:$0xf]
    %v131 = vld [vmem:[#allocation2 + $0x70] sm:$0xf]
    %v132 = vld [vmem:[#allocation2 + $0x74] sm:$0xf]
    %v133 = vld [vmem:[#allocation2 + $0x78] sm:$0xf]
    %v134 = vld [vmem:[#allocation2 + $0x7c] sm:$0xf]
    %v135 = vperm.slane %v36, 1
    %v152 = vunpack.c.l.b16 %v119
    %v153 = vunpack.c.l.b16 %v120
    %v154 = vunpack.c.l.b16 %v121
    %v155 = vunpack.c.l.b16 %v122
    %v156 = vunpack.c.l.b16 %v123
    %v157 = vunpack.c.l.b16 %v124
    %v158 = vunpack.c.l.b16 %v125
    %v159 = vunpack.c.l.b16 %v126
    %v160 = vunpack.c.l.b16 %v127
    %v161 = vunpack.c.l.b16 %v128
    %v162 = vunpack.c.l.b16 %v129
    %v163 = vunpack.c.l.b16 %v130
    %v164 = vunpack.c.l.b16 %v131
    %v165 = vunpack.c.l.b16 %v132
    %v166 = vunpack.c.l.b16 %v133
    %v167 = vunpack.c.l.b16 %v134
    %v168 = vpack.c.b16 %v153, %v152
    %v169 = vpack.c.b16 %v155, %v154
    %v170 = vpack.c.b16 %v157, %v156
    %v171 = vpack.c.b16 %v159, %v158
    %v172 = vpack.c.b16 %v161, %v160
    %v173 = vpack.c.b16 %v163, %v162
    %v174 = vpack.c.b16 %v165, %v164
    %v175 = vpack.c.b16 %v167, %v166
    %184 = vmatpush.bf16.msra.mxu0 %v175
    %185 = vmatpush.bf16.msra.mxu0 %v174
    %186 = vmatpush.bf16.msra.mxu0 %v173
    %187 = vmatpush.bf16.msra.mxu0 %v172
    %188 = vmatpush.bf16.msra.mxu0 %v171
    %189 = vmatpush.bf16.msra.mxu0 %v170
    %190 = vmatpush.bf16.msra.mxu0 %v169
    %191 = vmatpush.bf16.msra.mxu0 %v168
    %192 = vmatmul.bf16.gmra.mxu0 %v118
    %v193 = vpop.f32.mrf.mxu0
    %v194 = vadd.f32 %v135, %v193
    %v195 = vpop.f32.mrf.mxu0
    %196 = vdwg.mxu0
    %v197 = vmax.f32 %v194, 0.0
    %v198 = vlaneseq
    %v199 = vand.u32 %v198, 127
    %vm200 = vcmp.ge.s32.totalorder %v199, 64
    %vm201 = vcmp.lt.s32.totalorder %v199, 96
    %vm202 = vmand %vm200, %vm201
    %v203 = vld [vmem:[%s1] sm:$0xff]
    %v204 = vld [vmem:[#allocation2 + $0x80] sm:$0xf]
    %v205 = vld [vmem:[#allocation2 + $0x84] sm:$0xf]
    %v206 = vld [vmem:[#allocation2 + $0x88] sm:$0xf]
    %v207 = vld [vmem:[#allocation2 + $0x8c] sm:$0xf]
    %v208 = vld [vmem:[#allocation2 + $0x90] sm:$0xf]
    %v209 = vld [vmem:[#allocation2 + $0x94] sm:$0xf]
    %v210 = vld [vmem:[#allocation2 + $0x98] sm:$0xf]
    %v211 = vld [vmem:[#allocation2 + $0x9c] sm:$0xf]
    %213 = vrot.lane.b32.xlu0 %v203, 32
    %v214 = vpop.permute.xlu0 %213
    %vm216 = vcmask 261120
    %v217 = vsel %vm216, %v197, %v214
    %v218 = vpack.c.bf16 %v217, %v217
    %v219 = vperm.slane %v36, 2
    %v228 = vunpack.c.l.b16 %v204
    %v229 = vunpack.c.l.b16 %v205
    %v230 = vunpack.c.l.b16 %v206
    %v231 = vunpack.c.l.b16 %v207
    %v232 = vunpack.c.l.b16 %v208
    %v233 = vunpack.c.l.b16 %v209
    %v234 = vunpack.c.l.b16 %v210
    %v235 = vunpack.c.l.b16 %v211
    %v236 = vpack.c.b16 %v229, %v228
    %v237 = vpack.c.b16 %v231, %v230
    %v238 = vpack.c.b16 %v233, %v232
    %v239 = vpack.c.b16 %v235, %v234
    %vm244 = vcmask 523264
    %v246 = vsel %vm244, %v218, 0
    %248 = vmatpush.bf16.msra.mxu0 0
    %249 = vmatpush.bf16.msra.mxu0 0
    %250 = vmatpush.bf16.msra.mxu0 0
    %251 = vmatpush.bf16.msra.mxu0 0
    %252 = vmatpush.bf16.msra.mxu0 %v239
    %253 = vmatpush.bf16.msra.mxu0 %v238
    %254 = vmatpush.bf16.msra.mxu0 %v237
    %255 = vmatpush.bf16.msra.mxu0 %v236
    %256 = vmatmul.bf16.gmra.mxu0 %v246
    %v257 = vpop.f32.mrf.mxu0
    %v258 = vadd.f32 %v219, %v257
    %v259 = vpop.f32.mrf.mxu0
    %260 = vdwg.mxu0
    %v261 = vtanh.pop %v258
    %v262 = vxor.u32 %v258, 2147483648
    %v263 = vmul.f32 %v262, 1.442695
    %v264 = vpow.pop %v263
    %v265 = vadd.f32 %v264, 1.0
    %v266 = vrcp.pop %v265
    %v267 = vmul.f32 %v265, %v266
    %v268 = vsub.f32 1.0, %v267
    %v269 = vmul.f32 %v266, %v268
    %v270 = vadd.f32 %v266, %v269
    %vm271 = vweird.f32 %v265
    %vm272 = vweird.f32 %v266
    %vm273 = vmor %vm271, %vm272
    %v274 = vsel %vm273, %v266, %v270
    %v275 = vand.u32 2147483647, %v265
    %vm276 = vcmp.eq.f32.partialorder %v275, 8.507059e+37
    %v277 = vand.u32 %v265, 2147483648
    %v278 = vor.u32 1.1754944e-38, %v277
    %v279 = vsel %vm276, %v278, %v274
    %v280 = vmul.f32 1.0, %v279
    %v281 = vsel %vm202, %v261, %v280
    %v282 = vmul.f32 %v281, %v203
    %284 = vrot.lane.b32.xlu0 %v281, 64
    %v285 = vpop.permute.xlu0 %284
    %v287 = vmul.f32 %v281, %v285
    %289 = vrot.lane.b32.xlu0 %v287, 32
    %v290 = vpop.permute.xlu0 %289
    %v292 = vadd.f32 %v282, %v290
    %v293 = vtanh.pop %v292
    %295 = vrot.lane.b32.xlu0 %v293, 64
    %v296 = vpop.permute.xlu0 %295
    %v298 = vmul.f32 %v281, %v296
    %300 = vrot.lane.b32.xlu0 %v298, 32
    %v301 = vpop.permute.xlu0 %300
    %v303 = vsel %vm216, %v301, %v292
    %v304 = vsel %vm244, %v303, 0.0
    %305 = vst [vmem:[%s5] sm:$0xff] %v304
    %v306 = vpack.c.bf16 %v298, %v298
    %v307 = vld [vmem:[#allocation2 + $0xa0] sm:$0xf]
    %v308 = vld [vmem:[#allocation2 + $0xa4] sm:$0xf]
    %v309 = vld [vmem:[#allocation2 + $0xa8] sm:$0xf]
    %v310 = vld [vmem:[#allocation2 + $0xac] sm:$0xf]
    %v311 = vperm.slane %v36, 3
    %313 = vrot.lane.b32.xlu0 %v306, 32
    %v314 = vpop.permute.xlu0 %313
    %v319 = vunpack.c.l.b16 %v307
    %v320 = vunpack.c.l.b16 %v308
    %v321 = vunpack.c.l.b16 %v309
    %v322 = vunpack.c.l.b16 %v310
    %v323 = vpack.c.b16 %v320, %v319
    %v324 = vpack.c.b16 %v322, %v321
    %v328 = vsel %vm216, %v314, 0
    %330 = vmatpush.bf16.msra.mxu0 0
    %331 = vmatpush.bf16.msra.mxu0 0
    %332 = vmatpush.bf16.msra.mxu0 0
    %333 = vmatpush.bf16.msra.mxu0 0
    %334 = vmatpush.bf16.msra.mxu0 0
    %335 = vmatpush.bf16.msra.mxu0 0
    %336 = vmatpush.bf16.msra.mxu0 %v324
    %337 = vmatpush.bf16.msra.mxu0 %v323
    %338 = vmatmul.bf16.gmra.mxu0 %v328
    %v339 = vpop.f32.mrf.mxu0
    %v340 = vadd.f32 %v311, %v339
    %v341 = vpop.f32.mrf.mxu0
    %342 = vdwg.mxu0
    %v343 = vmax.f32 %v340, 0.0
    %v344 = vpack.c.bf16 %v343, %v343
    %v345 = vld [vmem:[#allocation2 + $0xb0] sm:$0xf]
    %v346 = vld [vmem:[#allocation2 + $0xb4] sm:$0xf]
    %v347 = vld [vmem:[#allocation2 + $0xb8] sm:$0xf]
    %v348 = vld [vmem:[#allocation2 + $0xbc] sm:$0xf]
    %v349 = vld [vmem:[#allocation2 + $0xc0] sm:$0xf]
    %v350 = vld [vmem:[#allocation2 + $0xc4] sm:$0xf]
    %v351 = vld [vmem:[#allocation2 + $0xc8] sm:$0xf]
    %v352 = vld [vmem:[#allocation2 + $0xcc] sm:$0xf]
    %v353 = vld [vmem:[#allocation2 + $0xd0] sm:$0xf]
    %v354 = vld [vmem:[#allocation2 + $0xd4] sm:$0xf]
    %v355 = vld [vmem:[#allocation2 + $0xd8] sm:$0xf]
    %v356 = vld [vmem:[#allocation2 + $0xdc] sm:$0xf]
    %v357 = vld [vmem:[#allocation2 + $0xe0] sm:$0xf]
    %v358 = vld [vmem:[#allocation2 + $0xe4] sm:$0xf]
    %v359 = vld [vmem:[#allocation2 + $0xe8] sm:$0xf]
    %v360 = vld [vmem:[#allocation2 + $0xec] sm:$0xf]
    %v361 = vperm.slane %v36, 4
    %v378 = vunpack.c.l.b16 %v345
    %v379 = vunpack.c.l.b16 %v346
    %v380 = vunpack.c.l.b16 %v347
    %v381 = vunpack.c.l.b16 %v348
    %v382 = vunpack.c.l.b16 %v349
    %v383 = vunpack.c.l.b16 %v350
    %v384 = vunpack.c.l.b16 %v351
    %v385 = vunpack.c.l.b16 %v352
    %v386 = vunpack.c.l.b16 %v353
    %v387 = vunpack.c.l.b16 %v354
    %v388 = vunpack.c.l.b16 %v355
    %v389 = vunpack.c.l.b16 %v356
    %v390 = vunpack.c.l.b16 %v357
    %v391 = vunpack.c.l.b16 %v358
    %v392 = vunpack.c.l.b16 %v359
    %v393 = vunpack.c.l.b16 %v360
    %v394 = vpack.c.b16 %v379, %v378
    %v395 = vpack.c.b16 %v381, %v380
    %v396 = vpack.c.b16 %v383, %v382
    %v397 = vpack.c.b16 %v385, %v384
    %v398 = vpack.c.b16 %v387, %v386
    %v399 = vpack.c.b16 %v389, %v388
    %v400 = vpack.c.b16 %v391, %v390
    %v401 = vpack.c.b16 %v393, %v392
    %410 = vmatpush.bf16.msra.mxu0 %v401
    %411 = vmatpush.bf16.msra.mxu0 %v400
    %412 = vmatpush.bf16.msra.mxu0 %v399
    %413 = vmatpush.bf16.msra.mxu0 %v398
    %414 = vmatpush.bf16.msra.mxu0 %v397
    %415 = vmatpush.bf16.msra.mxu0 %v396
    %416 = vmatpush.bf16.msra.mxu0 %v395
    %417 = vmatpush.bf16.msra.mxu0 %v394
    %418 = vmatmul.bf16.gmra.mxu0 %v344
    %v419 = vpop.f32.mrf.mxu0
    %v420 = vadd.f32 %v361, %v419
    %v421 = vpop.f32.mrf.mxu0
    %422 = vdwg.mxu0
    %vm423 = vcmp.lt.s32.totalorder %v199, 8
    %v424 = vsel %vm423, %v420, -1e+30
    %425 = vmax.xlane.f32.xlu0 %v424
    %v426 = vpop.xlane.xlu0 %425
    %v427 = vsub.f32 %v424, %v426
    %v428 = vmul.f32 %v427, 1.442695
    %v429 = vpow.pop %v428
    %430 = vadd.xlane.f32.xlu0 %v429
    %v431 = vpop.xlane.xlu0 %430
    %v432 = vrcp.pop %v431
    %v433 = vmul.f32 %v429, %v432
    %434 = vst [vmem:[%s4] sm:$0xff] %v433
    // Predicated region
    $region22: #{forward.1} parent=1 // pred_check
      _
    $region23: #{forward.1} parent=1 // pred_check_branch
      %436 = sbr.rel (0) target = $region25
    $region24: #{forward.1} parent=1 // pred_region
      _
    $region25: #{forward.1} parent=1 // pred_fallthru
      _
    // Predicated region
    $region26: #{forward.1} parent=1 // pred_check
      _
    $region27: #{forward.1} parent=1 // pred_check_branch
      %438 = sbr.rel (0) target = $region29
    $region28: #{forward.1} parent=1 // pred_region
      _
    $region29: #{forward.1} parent=1 // pred_fallthru
      _
    // Predicated region
    $region30: #{forward.1} parent=1 // pred_check
      _
    $region31: #{forward.1} parent=1 // pred_check_branch
      %440 = sbr.rel (0) target = $region33
    $region32: #{forward.1} parent=1 // pred_region
      _
    $region33: #{forward.1} parent=1 // pred_fallthru
      _
    // Predicated region
    $region34: #{forward.1} parent=1 // pred_check
      _
    $region35: #{forward.1} parent=1 // pred_check_branch
      %442 = sbr.rel (0) target = $region37
    $region36: #{forward.1} parent=1 // pred_region
      _
    $region37: #{forward.1} parent=1 // pred_fallthru
      _
    %443 = vsyncpa [#allocation3], 1

</llo_original>
